<compile_context>
chip_gen: v5e
topology: v5e:2x2
jax: 0.10.0
libtpu: 0.0.40
codegen_flags: <defaults>
</compile_context>

<pallas_src>
import jax
import jax.numpy as jnp
from jax.experimental import pallas as pl
from jax.experimental.pallas import tpu as pltpu

EPS = 1e-5  # nn.BatchNorm2d default eps


# ---------------------------------------------------------------------------
# Pass 1 kernel: conv tile (patches @ weight + bias) + global BN statistics
# ---------------------------------------------------------------------------
def _conv_stats_kernel(p_ref, w_ref, b_ref, y_ref, sum_ref, sq_ref):
    # p_ref:   (TM, K)     bf16 im2col patch tile, K = 9*Cin
    # w_ref:   (K, Cout)   bf16 conv weight (resident across all M tiles)
    # b_ref:   (1, Cout)   f32 conv bias (resident)
    # y_ref:   (TM, Cout)  f32 conv output tile
    # sum_ref: (1, Cout)   f32 running per-channel sum   (resident accumulator)
    # sq_ref:  (1, Cout)   f32 running per-channel sumsq (resident accumulator)
    @pl.when(pl.program_id(0) == 0)
    def _init():
        sum_ref[...] = jnp.zeros_like(sum_ref)
        sq_ref[...] = jnp.zeros_like(sq_ref)

    y = jnp.dot(p_ref[...], w_ref[...], preferred_element_type=jnp.float32)
    y = y + b_ref[...]
    y_ref[...] = y
    sum_ref[...] += jnp.sum(y, axis=0, keepdims=True)
    sq_ref[...] += jnp.sum(y * y, axis=0, keepdims=True)


# ---------------------------------------------------------------------------
# Pass 2 kernel: y * scale + shift, ReLU  (lane-dense elementwise)
# ---------------------------------------------------------------------------
def _bn_relu_kernel(y_ref, scale_ref, shift_ref, o_ref):
    yh = y_ref[...] * scale_ref[...] + shift_ref[...]
    o_ref[...] = jnp.maximum(yh, 0.0).astype(o_ref.dtype)


# ---------------------------------------------------------------------------
# Helpers
# ---------------------------------------------------------------------------
def _im2col_stride2(x_nchw):
    """NCHW -> (N*Ho*Wo, 9*C) patches for a 3x3 / stride-2 / pad-1 conv."""
    N, C, H, W = x_nchw.shape
    Ho = (H + 2 - 3) // 2 + 1
    Wo = (W + 2 - 3) // 2 + 1
    x = jnp.transpose(x_nchw, (0, 2, 3, 1))                    # (N, H, W, C)
    xp = jnp.pad(x, ((0, 0), (1, 1), (1, 1), (0, 0)))          # (N, H+2, W+2, C)
    cols = [
        xp[:, kh:kh + 2 * (Ho - 1) + 1:2, kw:kw + 2 * (Wo - 1) + 1:2, :]
        for kh in range(3) for kw in range(3)
    ]
    patches = jnp.stack(cols, axis=3)                          # (N, Ho, Wo, 9, C)
    return patches.reshape(N * Ho * Wo, 9 * C), Ho, Wo


def _choose_tile_m(m):
    """Largest multiple-of-8 row tile <= 512 dividing m with >= 2 tiles (pipelining)."""
    for tm in (512, 256, 128, 64, 32, 16, 8):
        if m % tm == 0 and m // tm >= 2:
            return tm
    return m


def _choose_tile_r(r):
    for tr in (256, 128, 64, 32, 16, 8):
        if r % tr == 0:
            return tr
    return r


def _vmem_limit(block_bytes):
    # Double-buffered pipeline copies of every block plus generous headroom;
    # clamped to 32 MiB so it is safe on v7x (64 MiB physical VMEM) as well as
    # v5e/v6e (128 MiB physical, 16/32 MiB default scoped).
    return int(min(32 * 1024 * 1024, max(8 * 1024 * 1024, 8 * block_bytes)))


# ---------------------------------------------------------------------------
# Forward
# ---------------------------------------------------------------------------
def skip2d_forward(x_nchw, w_oihw, b, gamma, beta):
    """Conv2d(3x3, stride 2, pad 1) -> BatchNorm2d (batch stats) -> ReLU.

    x_nchw: (N, Cin, H, W) f32.  Returns (N, Cout, Ho, Wo) f32.
    """
    N, C, H, W = x_nchw.shape
    Cout = w_oihw.shape[0]

    # --- glue: strided im2col, bf16 operands for the MXU ---
    patches, Ho, Wo = _im2col_stride2(x_nchw)
    M, K = patches.shape
    patches = patches.astype(jnp.bfloat16)
    w2d = jnp.transpose(w_oihw, (2, 3, 1, 0)).reshape(K, Cout).astype(jnp.bfloat16)
    b2d = b.reshape(1, Cout).astype(jnp.float32)

    # --- pass 1: tiled conv + global per-channel sum / sumsq ---
    tm = _choose_tile_m(M)
    blk1_bytes = tm * K * 2 + K * Cout * 2 + Cout * 4 + tm * Cout * 4 + 2 * Cout * 4
    y, s, sq = pl.pallas_call(
        _conv_stats_kernel,
        out_shape=(
            jax.ShapeDtypeStruct((M, Cout), jnp.float32),
            jax.ShapeDtypeStruct((1, Cout), jnp.float32),
            jax.ShapeDtypeStruct((1, Cout), jnp.float32),
        ),
        grid=(M // tm,),
        in_specs=[
            pl.BlockSpec((tm, K), lambda i: (i, 0)),      # streamed patch tiles
            pl.BlockSpec((K, Cout), lambda i: (0, 0)),    # weight: one DMA, resident
            pl.BlockSpec((1, Cout), lambda i: (0, 0)),    # bias: resident
        ],
        out_specs=(
            pl.BlockSpec((tm, Cout), lambda i: (i, 0)),
            pl.BlockSpec((1, Cout), lambda i: (0, 0)),    # resident accumulator
            pl.BlockSpec((1, Cout), lambda i: (0, 0)),    # resident accumulator
        ),
        compiler_params=pltpu.CompilerParams(
            dimension_semantics=("arbitrary",),           # sequential: global BN reduction
            vmem_limit_bytes=_vmem_limit(blk1_bytes),
        ),
        cost_estimate=pl.CostEstimate(
            flops=2 * M * K * Cout,
            transcendentals=0,
            bytes_accessed=M * K * 2 + K * Cout * 2 + M * Cout * 4 + 3 * Cout * 4,
        ),
    )(patches, w2d, b2d)

    # --- tiny O(Cout) host math: fold BN into per-channel scale/shift ---
    cnt = jnp.float32(M)
    mean = s / cnt
    var = jnp.maximum(sq / cnt - mean * mean, 0.0)        # clamp guards cancellation
    inv = jax.lax.rsqrt(var + EPS)
    scale = gamma.reshape(1, Cout).astype(jnp.float32) * inv
    shift = beta.reshape(1, Cout).astype(jnp.float32) - mean * scale

    # --- pass 2: lane-dense normalize + ReLU ---
    # (M, Cout) -> (M*Cout/L, L) is a free row-major reshape; with Cout=8 this gives
    # full 128-lane loads/stores instead of 8-of-128 masked stores.
    if Cout % 128 == 0:
        L = Cout
    elif 128 % Cout == 0 and M % (128 // Cout) == 0:
        L = 128
    else:
        L = Cout
    rep = L // Cout
    R = (M * Cout) // L
    y2 = y.reshape(R, L)
    scale_l = jnp.tile(scale.reshape(Cout), rep).reshape(1, L)
    shift_l = jnp.tile(shift.reshape(Cout), rep).reshape(1, L)

    tr = _choose_tile_r(R)
    blk2_bytes = 2 * tr * L * 4 + 2 * L * 4
    out2 = pl.pallas_call(
        _bn_relu_kernel,
        out_shape=jax.ShapeDtypeStruct((R, L), jnp.float32),
        grid=(R // tr,),
        in_specs=[
            pl.BlockSpec((tr, L), lambda i: (i, 0)),
            pl.BlockSpec((1, L), lambda i: (0, 0)),
            pl.BlockSpec((1, L), lambda i: (0, 0)),
        ],
        out_specs=pl.BlockSpec((tr, L), lambda i: (i, 0)),
        compiler_params=pltpu.CompilerParams(
            dimension_semantics=("parallel",),            # independent tiles (v7x: 2 TCs)
            vmem_limit_bytes=_vmem_limit(blk2_bytes),
        ),
        cost_estimate=pl.CostEstimate(
            flops=3 * R * L,
            transcendentals=0,
            bytes_accessed=2 * R * L * 4 + 2 * L * 4,
        ),
    )(y2, scale_l, shift_l)

    out = out2.reshape(N, Ho, Wo, Cout)
    return jnp.transpose(out, (0, 3, 1, 2))               # back to NCHW


# ---------------------------------------------------------------------------
# References for correctness checks
# ---------------------------------------------------------------------------
def _reference_bf16_matched(x, w, b, gamma, beta):
    """Plain-JAX reference with the same bf16-operand math as the kernel."""
    N, C, H, W = x.shape
    Cout = w.shape[0]
    patches, Ho, Wo = _im2col_stride2(x)
    M, K = patches.shape
    w2d = jnp.transpose(w, (2, 3, 1, 0)).reshape(K, Cout)
    y = jnp.dot(patches.astype(jnp.bfloat16), w2d.astype(jnp.bfloat16),
                preferred_element_type=jnp.float32) + b.reshape(1, Cout)
    cnt = jnp.float32(M)
    mean = jnp.sum(y, axis=0, keepdims=True) / cnt
    var = jnp.maximum(jnp.sum(y * y, axis=0, keepdims=True) / cnt - mean * mean, 0.0)
    inv = jax.lax.rsqrt(var + EPS)
    scale = gamma.reshape(1, Cout) * inv
    shift = beta.reshape(1, Cout) - mean * scale
    out = jnp.maximum(y * scale + shift, 0.0)
    return jnp.transpose(out.reshape(N, Ho, Wo, Cout), (0, 3, 1, 2))


def _reference_f32(x, w, b, gamma, beta):
    """Independent f32 reference (lax.conv) matching PyTorch semantics."""
    Cout = w.shape[0]
    y = jax.lax.conv_general_dilated(
        x, w, window_strides=(2, 2), padding=((1, 1), (1, 1)),
        dimension_numbers=("NCHW", "OIHW", "NCHW"))
    y = y + b.reshape(1, Cout, 1, 1)
    mean = jnp.mean(y, axis=(0, 2, 3), keepdims=True)
    var = jnp.mean((y - mean) ** 2, axis=(0, 2, 3), keepdims=True)
    yh = ((y - mean) * jax.lax.rsqrt(var + EPS)
          * gamma.reshape(1, Cout, 1, 1) + beta.reshape(1, Cout, 1, 1))
    return jnp.maximum(yh, 0.0)


# ---------------------------------------------------------------------------
if __name__ == "__main__":
    # Small shapes consistent with the module: in_chan=4, mid_chan=8, 16x16 spatial.
    N, C_IN, C_MID, H, W = 2, 4, 8, 16, 16
    HO = (H + 2 - 3) // 2 + 1
    WO = (W + 2 - 3) // 2 + 1

    key = jax.random.PRNGKey(0)
    kx, kw, kb = jax.random.split(key, 3)
    x = jax.random.normal(kx, (N, C_IN, H, W), dtype=jnp.float32)

    # Deterministic parameter init (synthetic; shapes follow nn.Conv2d / nn.BatchNorm2d).
    fan_in = C_IN * 3 * 3
    bound = 1.0 / (fan_in ** 0.5)
    w_conv = jax.random.uniform(kw, (C_MID, C_IN, 3, 3), jnp.float32, -bound, bound)
    b_conv = jax.random.uniform(kb, (C_MID,), jnp.float32, -bound, bound)
    gamma = jnp.ones((C_MID,), jnp.float32)   # BatchNorm2d default weight
    beta = jnp.zeros((C_MID,), jnp.float32)   # BatchNorm2d default bias

    fwd = jax.jit(skip2d_forward)
    out = jax.block_until_ready(fwd(x, w_conv, b_conv, gamma, beta))
    assert out.shape == (N, C_MID, HO, WO)

    ref_tight = jax.block_until_ready(_reference_bf16_matched(x, w_conv, b_conv, gamma, beta))
    ref_loose = jax.block_until_ready(_reference_f32(x, w_conv, b_conv, gamma, beta))

    # Tight check: identical bf16-operand math (validates kernel mechanics).
    assert jnp.allclose(out, ref_tight, atol=1e-4, rtol=1e-3), float(
        jnp.max(jnp.abs(out - ref_tight)))
    # Loose check: full-f32 PyTorch-semantics reference (bounds the bf16 cast error).
    assert jnp.allclose(out, ref_loose, atol=5e-2, rtol=5e-2), float(
        jnp.max(jnp.abs(out - ref_loose)))

    print("KERNEL_OK")
</pallas_src>

<mosaic_0001>
module attributes {stable_mosaic.version = 11 : i64} {
  func.func @_conv_stats_kernel(%arg0: i32, %arg1: memref<64x36xbf16, #tpu.memory_space<vmem>>, %arg2: memref<36x8xbf16, #tpu.memory_space<vmem>>, %arg3: memref<1x8xf32, #tpu.memory_space<vmem>>, %arg4: memref<64x8xf32, #tpu.memory_space<vmem>>, %arg5: memref<1x8xf32, #tpu.memory_space<vmem>>, %arg6: memref<1x8xf32, #tpu.memory_space<vmem>>) attributes {dimension_semantics = [#tpu.dimension_semantics<arbitrary>], iteration_bounds = array<i64: 2>, scalar_prefetch = 0 : i64, scratch_operands = 0 : i64, tpu.core_type = #tpu.core_type<tc>, window_params = [{transform_indices = @transform_0, window_bounds = array<i64: 64, 36>}, {pipeline_mode = #tpu.pipeline_mode<synchronous>, transform_indices = @transform_1, window_bounds = array<i64: 36, 8>}, {pipeline_mode = #tpu.pipeline_mode<synchronous>, transform_indices = @transform_2, window_bounds = array<i64: 1, 8>}, {transform_indices = @transform_3, window_bounds = array<i64: 64, 8>}, {pipeline_mode = #tpu.pipeline_mode<synchronous>, transform_indices = @transform_4, window_bounds = array<i64: 1, 8>}, {pipeline_mode = #tpu.pipeline_mode<synchronous>, transform_indices = @transform_5, window_bounds = array<i64: 1, 8>}]} {
    %c0_i32 = arith.constant 0 : i32
    %0 = arith.cmpi eq, %arg0, %c0_i32 : i32
    %1 = arith.extui %0 : i1 to i32
    %c0_i32_0 = arith.constant 0 : i32
    %2 = arith.cmpi ne, %1, %c0_i32_0 : i32
    scf.if %2 {
      %cst_18 = arith.constant 0.000000e+00 : f32
      %21 = vector.broadcast %cst_18 : f32 to vector<1x8xf32>
      %c0_19 = arith.constant 0 : index
      %c0_20 = arith.constant 0 : index
      %22 = vector.load %arg5[%c0_19, %c0_20] : memref<1x8xf32, #tpu.memory_space<vmem>>, vector<1x8xf32>
      tpu.vector_store %arg5[%c0_19, %c0_20], %21 {strides = array<i32>} : memref<1x8xf32, #tpu.memory_space<vmem>>, vector<1x8xf32>,
      %cst_21 = arith.constant 0.000000e+00 : f32
      %23 = vector.broadcast %cst_21 : f32 to vector<1x8xf32>
      %c0_22 = arith.constant 0 : index
      %c0_23 = arith.constant 0 : index
      %24 = vector.load %arg6[%c0_22, %c0_23] : memref<1x8xf32, #tpu.memory_space<vmem>>, vector<1x8xf32>
      tpu.vector_store %arg6[%c0_22, %c0_23], %23 {strides = array<i32>} : memref<1x8xf32, #tpu.memory_space<vmem>>, vector<1x8xf32>,
    } else {
    }
    %c0 = arith.constant 0 : index
    %c0_1 = arith.constant 0 : index
    %3 = vector.load %arg1[%c0, %c0_1] : memref<64x36xbf16, #tpu.memory_space<vmem>>, vector<64x36xbf16>
    %c0_2 = arith.constant 0 : index
    %c0_3 = arith.constant 0 : index
    %4 = vector.load %arg2[%c0_2, %c0_3] : memref<36x8xbf16, #tpu.memory_space<vmem>>, vector<36x8xbf16>
    %cst = arith.constant dense<0.000000e+00> : vector<64x8xf32>
    %5 = tpu.matmul %3, %4, %cst {dimension_numbers = #tpu.dot_dimension_numbers<[1], [0], [0], [1], [0, 0, 1, 1], [], []>} : vector<64x36xbf16>, vector<36x8xbf16>, vector<64x8xf32> -> vector<64x8xf32>
    %c0_4 = arith.constant 0 : index
    %c0_5 = arith.constant 0 : index
    %6 = vector.load %arg3[%c0_4, %c0_5] : memref<1x8xf32, #tpu.memory_space<vmem>>, vector<1x8xf32>
    %7 = vector.broadcast %6 : vector<1x8xf32> to vector<64x8xf32>
    %8 = arith.addf %5, %7 : vector<64x8xf32>
    %c0_6 = arith.constant 0 : index
    %c0_7 = arith.constant 0 : index
    %9 = vector.load %arg4[%c0_6, %c0_7] : memref<64x8xf32, #tpu.memory_space<vmem>>, vector<64x8xf32>
    tpu.vector_store %arg4[%c0_6, %c0_7], %8 {strides = array<i32>} : memref<64x8xf32, #tpu.memory_space<vmem>>, vector<64x8xf32>,
    %c0_8 = arith.constant 0 : index
    %c0_9 = arith.constant 0 : index
    %10 = vector.load %arg5[%c0_8, %c0_9] : memref<1x8xf32, #tpu.memory_space<vmem>>, vector<1x8xf32>
    %cst_10 = arith.constant dense<0.000000e+00> : vector<8xf32>
    %11 = vector.multi_reduction <add>, %8, %cst_10 [0] : vector<64x8xf32> to vector<8xf32>
    %12 = vector.shape_cast %11 : vector<8xf32> to vector<1x8xf32>
    %13 = arith.addf %10, %12 : vector<1x8xf32>
    %c0_11 = arith.constant 0 : index
    %c0_12 = arith.constant 0 : index
    %14 = vector.load %arg5[%c0_11, %c0_12] : memref<1x8xf32, #tpu.memory_space<vmem>>, vector<1x8xf32>
    tpu.vector_store %arg5[%c0_11, %c0_12], %13 {strides = array<i32>} : memref<1x8xf32, #tpu.memory_space<vmem>>, vector<1x8xf32>,
    %c0_13 = arith.constant 0 : index
    %c0_14 = arith.constant 0 : index
    %15 = vector.load %arg6[%c0_13, %c0_14] : memref<1x8xf32, #tpu.memory_space<vmem>>, vector<1x8xf32>
    %16 = arith.mulf %8, %8 : vector<64x8xf32>
    %cst_15 = arith.constant dense<0.000000e+00> : vector<8xf32>
    %17 = vector.multi_reduction <add>, %16, %cst_15 [0] : vector<64x8xf32> to vector<8xf32>
    %18 = vector.shape_cast %17 : vector<8xf32> to vector<1x8xf32>
    %19 = arith.addf %15, %18 : vector<1x8xf32>
    %c0_16 = arith.constant 0 : index
    %c0_17 = arith.constant 0 : index
    %20 = vector.load %arg6[%c0_16, %c0_17] : memref<1x8xf32, #tpu.memory_space<vmem>>, vector<1x8xf32>
    tpu.vector_store %arg6[%c0_16, %c0_17], %19 {strides = array<i32>} : memref<1x8xf32, #tpu.memory_space<vmem>>, vector<1x8xf32>,
    return
  }
  func.func @transform_0(%arg0: i32) -> (i32, i32) {
    %c0_i32 = arith.constant 0 : i32
    %c0_i32_0 = arith.constant 0 : i32
    return %arg0, %c0_i32 : i32, i32
  }
  func.func @transform_1(%arg0: i32) -> (i32, i32) {
    %c0_i32 = arith.constant 0 : i32
    %c0_i32_0 = arith.constant 0 : i32
    %c0_i32_1 = arith.constant 0 : i32
    return %c0_i32, %c0_i32_0 : i32, i32
  }
  func.func @transform_2(%arg0: i32) -> (i32, i32) {
    %c0_i32 = arith.constant 0 : i32
    %c0_i32_0 = arith.constant 0 : i32
    %c0_i32_1 = arith.constant 0 : i32
    return %c0_i32, %c0_i32_0 : i32, i32
  }
  func.func @transform_3(%arg0: i32) -> (i32, i32) {
    %c0_i32 = arith.constant 0 : i32
    %c0_i32_0 = arith.constant 0 : i32
    return %arg0, %c0_i32 : i32, i32
  }
  func.func @transform_4(%arg0: i32) -> (i32, i32) {
    %c0_i32 = arith.constant 0 : i32
    %c0_i32_0 = arith.constant 0 : i32
    %c0_i32_1 = arith.constant 0 : i32
    return %c0_i32, %c0_i32_0 : i32, i32
  }
  func.func @transform_5(%arg0: i32) -> (i32, i32) {
    %c0_i32 = arith.constant 0 : i32
    %c0_i32_0 = arith.constant 0 : i32
    %c0_i32_1 = arith.constant 0 : i32
    return %c0_i32, %c0_i32_0 : i32, i32
  }
}

module attributes {stable_mosaic.version = 11 : i64} {
  func.func @_bn_relu_kernel(%arg0: i32, %arg1: memref<8x128xf32, #tpu.memory_space<vmem>>, %arg2: memref<1x128xf32, #tpu.memory_space<vmem>>, %arg3: memref<1x128xf32, #tpu.memory_space<vmem>>, %arg4: memref<8x128xf32, #tpu.memory_space<vmem>>) attributes {dimension_semantics = [#tpu.dimension_semantics<parallel>], iteration_bounds = array<i64: 1>, scalar_prefetch = 0 : i64, scratch_operands = 0 : i64, tpu.core_type = #tpu.core_type<tc>, window_params = [{transform_indices = @transform_0, window_bounds = array<i64: 8, 128>}, {pipeline_mode = #tpu.pipeline_mode<synchronous>, transform_indices = @transform_1, window_bounds = array<i64: 1, 128>}, {pipeline_mode = #tpu.pipeline_mode<synchronous>, transform_indices = @transform_2, window_bounds = array<i64: 1, 128>}, {transform_indices = @transform_3, window_bounds = array<i64: 8, 128>}]} {
    %c0 = arith.constant 0 : index
    %c0_0 = arith.constant 0 : index
    %0 = vector.load %arg1[%c0, %c0_0] : memref<8x128xf32, #tpu.memory_space<vmem>>, vector<8x128xf32>
    %c0_1 = arith.constant 0 : index
    %c0_2 = arith.constant 0 : index
    %1 = vector.load %arg2[%c0_1, %c0_2] : memref<1x128xf32, #tpu.memory_space<vmem>>, vector<1x128xf32>
    %2 = vector.broadcast %1 : vector<1x128xf32> to vector<8x128xf32>
    %3 = arith.mulf %0, %2 : vector<8x128xf32>
    %c0_3 = arith.constant 0 : index
    %c0_4 = arith.constant 0 : index
    %4 = vector.load %arg3[%c0_3, %c0_4] : memref<1x128xf32, #tpu.memory_space<vmem>>, vector<1x128xf32>
    %5 = vector.broadcast %4 : vector<1x128xf32> to vector<8x128xf32>
    %6 = arith.addf %3, %5 : vector<8x128xf32>
    %cst = arith.constant 0.000000e+00 : f32
    %7 = vector.broadcast %cst : f32 to vector<8x128xf32>
    %8 = arith.maximumf %6, %7 : vector<8x128xf32>
    %c0_5 = arith.constant 0 : index
    %c0_6 = arith.constant 0 : index
    %9 = vector.load %arg4[%c0_5, %c0_6] : memref<8x128xf32, #tpu.memory_space<vmem>>, vector<8x128xf32>
    tpu.vector_store %arg4[%c0_5, %c0_6], %8 {strides = array<i32>} : memref<8x128xf32, #tpu.memory_space<vmem>>, vector<8x128xf32>,
    return
  }
  func.func @transform_0(%arg0: i32) -> (i32, i32) {
    %c0_i32 = arith.constant 0 : i32
    %c0_i32_0 = arith.constant 0 : i32
    return %arg0, %c0_i32 : i32, i32
  }
  func.func @transform_1(%arg0: i32) -> (i32, i32) {
    %c0_i32 = arith.constant 0 : i32
    %c0_i32_0 = arith.constant 0 : i32
    %c0_i32_1 = arith.constant 0 : i32
    return %c0_i32, %c0_i32_0 : i32, i32
  }
  func.func @transform_2(%arg0: i32) -> (i32, i32) {
    %c0_i32 = arith.constant 0 : i32
    %c0_i32_0 = arith.constant 0 : i32
    %c0_i32_1 = arith.constant 0 : i32
    return %c0_i32, %c0_i32_0 : i32, i32
  }
  func.func @transform_3(%arg0: i32) -> (i32, i32) {
    %c0_i32 = arith.constant 0 : i32
    %c0_i32_0 = arith.constant 0 : i32
    return %arg0, %c0_i32 : i32, i32
  }
}

</mosaic_0001>

<llo_original>
// kernel: tile.11
$region0: #{tile.11}
  %s0 = inlined_call_operand.vmem [shape: f32[16,8], index: 0, kind: input, shape index: {}]
  %s1 = inlined_call_operand.vmem [shape: f32[1,128], index: 1, kind: output, shape index: {}]
  $region1: #{tile.11} parent=0
    #allocation0 [shape = 'u8[4096]{0}', space=vmem, size = 0x1000, scoped, tag = 'scoped mem for output reshape']
    %v2 = vld [vmem:[%s0] sm:$0x1]
    %vm3 = vcmask 64512
    %4 = vst.msk [vmem:[#allocation0] sm:$0x1] %vm3, %v2
    %s5 = scalar_lea.vmem %s0, 15
    %v6 = vld [vmem:[%s5] sm:$0x1]
    %7 = vrot.lane.b32.xlu0 %v6, 120
    %v8 = vpop.permute.xlu0 %7
    %vm9 = vcmask 1048512
    %10 = vst.msk [vmem:[#allocation0] sm:$0x1] %vm9, %v8
    %s11 = scalar_lea.vmem %s0, 14
    %v12 = vld [vmem:[%s11] sm:$0x1]
    %13 = vrot.lane.b32.xlu0 %v12, 112
    %v14 = vpop.permute.xlu0 %13
    %vm15 = vcmask 982912
    %16 = vst.msk [vmem:[#allocation0] sm:$0x1] %vm15, %v14
    %s17 = scalar_lea.vmem %s0, 13
    %v18 = vld [vmem:[%s17] sm:$0x1]
    %19 = vrot.lane.b32.xlu0 %v18, 104
    %v20 = vpop.permute.xlu0 %19
    %vm21 = vcmask 917312
    %22 = vst.msk [vmem:[#allocation0] sm:$0x1] %vm21, %v20
    %s23 = scalar_lea.vmem %s0, 12
    %v24 = vld [vmem:[%s23] sm:$0x1]
    %25 = vrot.lane.b32.xlu0 %v24, 96
    %v26 = vpop.permute.xlu0 %25
    %vm27 = vcmask 851712
    %28 = vst.msk [vmem:[#allocation0] sm:$0x1] %vm27, %v26
    %s29 = scalar_lea.vmem %s0, 11
    %v30 = vld [vmem:[%s29] sm:$0x1]
    %31 = vrot.lane.b32.xlu0 %v30, 88
    %v32 = vpop.permute.xlu0 %31
    %vm33 = vcmask 786112
    %34 = vst.msk [vmem:[#allocation0] sm:$0x1] %vm33, %v32
    %s35 = scalar_lea.vmem %s0, 10
    %v36 = vld [vmem:[%s35] sm:$0x1]
    %37 = vrot.lane.b32.xlu0 %v36, 80
    %v38 = vpop.permute.xlu0 %37
    %vm39 = vcmask 720512
    %40 = vst.msk [vmem:[#allocation0] sm:$0x1] %vm39, %v38
    %s41 = scalar_lea.vmem %s0, 9
    %v42 = vld [vmem:[%s41] sm:$0x1]
    %43 = vrot.lane.b32.xlu0 %v42, 72
    %v44 = vpop.permute.xlu0 %43
    %vm45 = vcmask 654912
    %46 = vst.msk [vmem:[#allocation0] sm:$0x1] %vm45, %v44
    %s47 = scalar_lea.vmem %s0, 8
    %v48 = vld [vmem:[%s47] sm:$0x1]
    %49 = vrot.lane.b32.xlu0 %v48, 64
    %v50 = vpop.permute.xlu0 %49
    %vm51 = vcmask 589312
    %52 = vst.msk [vmem:[#allocation0] sm:$0x1] %vm51, %v50
    %s53 = scalar_lea.vmem %s0, 7
    %v54 = vld [vmem:[%s53] sm:$0x1]
    %55 = vrot.lane.b32.xlu0 %v54, 56
    %v56 = vpop.permute.xlu0 %55
    %vm57 = vcmask 523712
    %58 = vst.msk [vmem:[#allocation0] sm:$0x1] %vm57, %v56
    %s59 = scalar_lea.vmem %s0, 6
    %v60 = vld [vmem:[%s59] sm:$0x1]
    %61 = vrot.lane.b32.xlu0 %v60, 48
    %v62 = vpop.permute.xlu0 %61
    %vm63 = vcmask 458112
    %64 = vst.msk [vmem:[#allocation0] sm:$0x1] %vm63, %v62
    %s65 = scalar_lea.vmem %s0, 5
    %v66 = vld [vmem:[%s65] sm:$0x1]
    %67 = vrot.lane.b32.xlu0 %v66, 40
    %v68 = vpop.permute.xlu0 %67
    %vm69 = vcmask 392512
    %70 = vst.msk [vmem:[#allocation0] sm:$0x1] %vm69, %v68
    %s71 = scalar_lea.vmem %s0, 4
    %v72 = vld [vmem:[%s71] sm:$0x1]
    %73 = vrot.lane.b32.xlu0 %v72, 32
    %v74 = vpop.permute.xlu0 %73
    %vm75 = vcmask 326912
    %76 = vst.msk [vmem:[#allocation0] sm:$0x1] %vm75, %v74
    %s77 = scalar_lea.vmem %s0, 3
    %v78 = vld [vmem:[%s77] sm:$0x1]
    %79 = vrot.lane.b32.xlu0 %v78, 24
    %v80 = vpop.permute.xlu0 %79
    %vm81 = vcmask 261312
    %82 = vst.msk [vmem:[#allocation0] sm:$0x1] %vm81, %v80
    %s83 = scalar_lea.vmem %s0, 2
    %v84 = vld [vmem:[%s83] sm:$0x1]
    %85 = vrot.lane.b32.xlu0 %v84, 16
    %v86 = vpop.permute.xlu0 %85
    %vm87 = vcmask 195712
    %88 = vst.msk [vmem:[#allocation0] sm:$0x1] %vm87, %v86
    %s89 = scalar_lea.vmem %s0, 1
    %v90 = vld [vmem:[%s89] sm:$0x1]
    %91 = vrot.lane.b32.xlu0 %v90, 8
    %v92 = vpop.permute.xlu0 %91
    %vm93 = vcmask 130112
    %94 = vst.msk [vmem:[#allocation0] sm:$0x1] %vm93, %v92
    %s96 = ssub.s32 2, 1
    %v97 = vld [vmem:[#allocation0] sm:%s96]
    %s99 = ssub.s32 2, 1
    %100 = vst [vmem:[%s1] sm:%s99] %v97

// kernel: tile.10
$region0: #{tile.10}
  #allocation0 [shape = 's32[1]{0}', space=sflag, size = 0x4, scoped, tag = 'scoped memory for tile.10']
  %s0 = inlined_call_operand.vmem [shape: f32[8], index: 0, kind: input, shape index: {}]
  %s1 = inlined_call_operand.vmem [shape: f32[16,8], index: 1, kind: output, shape index: {}]
  // Predicated region
  $region2: #{tile.10} parent=0 // pred_check
    _
  $region3: #{tile.10} parent=0 // pred_check_branch
    %3 = sbr.rel (0) target = $region5
  $region4: #{tile.10} parent=0 // pred_region
    _
  $region5: #{tile.10} parent=0 // pred_fallthru
    _
  %v4 = vld [vmem:[%s0] ss:$0 sm:$0xff]
  %5 = vst [vmem:[%s1] sm:$0xff] %v4
  %s6 = scalar_lea.vmem %s1, 8
  %7 = vst [vmem:[%s6] sm:$0xff] %v4

// kernel: skip2d_forward.3
$region0: #{skip2d_forward.3}
  #allocation0 [shape = 'u32[]', space=smem, size = 0x4, offset = 0x4, fixed_abs, tag = 'smem constant byte address 0x4 - core index']
  #allocation1 [shape = 'u32[72,128]{1,0:T(1,128)}', space=vmem, size = 0x9000, scoped, tag = 'internal scratch']
  %s0 = inlined_call_operand.vmem [shape: f32[8,128], index: 0, kind: input, shape index: {}]
  %s1 = inlined_call_operand.vmem [shape: f32[1,128], index: 1, kind: input, shape index: {}]
  %s2 = inlined_call_operand.vmem [shape: f32[1,128], index: 2, kind: input, shape index: {}]
  %s3 = inlined_call_operand.vmem [shape: f32[8,128], index: 3, kind: output, shape index: {}]
  %s4 = sld [smem:[#allocation0]]
  $region22: #{skip2d_forward.3} parent=0
    _
  %s6 = ssub.s32 1, %s4
  %s7 = scalar_select 0, %s6, %s4
  // Predicated region
  $region2: #{skip2d_forward.3} parent=0 // pred_check
    _
  $region3: #{skip2d_forward.3} parent=0 // pred_check_branch
    %9 = sbr.rel (0) target = $region5
  $region4: #{skip2d_forward.3} parent=0 // pred_region
    _
  $region5: #{skip2d_forward.3} parent=0 // pred_fallthru
    _
  // Predicated region
  $region6: #{skip2d_forward.3} parent=0 // pred_check
    _
  $region7: #{skip2d_forward.3} parent=0 // pred_check_branch
    %11 = sbr.rel (0) target = $region9
  $region8: #{skip2d_forward.3} parent=0 // pred_region
    _
  $region9: #{skip2d_forward.3} parent=0 // pred_fallthru
    _
  // Predicated region
  $region10: #{skip2d_forward.3} parent=0 // pred_check
    _
  $region11: #{skip2d_forward.3} parent=0 // pred_check_branch
    %13 = sbr.rel (0) target = $region13
  $region12: #{skip2d_forward.3} parent=0 // pred_region
    _
  $region13: #{skip2d_forward.3} parent=0 // pred_fallthru
    _
  %v14 = vld [vmem:[%s0] sm:$0xff]
  %v15 = vld [vmem:[%s1] sm:$0x1]
  %v17 = vperm.slane %v15, 0
  %v19 = vmul.f32 %v14, %v17
  %v20 = vld [vmem:[%s2] sm:$0x1]
  %v22 = vperm.slane %v20, 0
  %v24 = vadd.f32 %v19, %v22
  %v25 = vmax.f32 %v24, 0.0
  %26 = vst [vmem:[%s3] sm:$0xff] %v25
  // Predicated region
  $region14: #{skip2d_forward.3} parent=0 // pred_check
    _
  $region15: #{skip2d_forward.3} parent=0 // pred_check_branch
    %28 = sbr.rel (0) target = $region17
  $region16: #{skip2d_forward.3} parent=0 // pred_region
    _
  $region17: #{skip2d_forward.3} parent=0 // pred_fallthru
    _
  // Predicated region
  $region18: #{skip2d_forward.3} parent=0 // pred_check
    _
  $region19: #{skip2d_forward.3} parent=0 // pred_check_branch
    %30 = sbr.rel (0) target = $region21
  $region20: #{skip2d_forward.3} parent=0 // pred_region
    _
  $region21: #{skip2d_forward.3} parent=0 // pred_fallthru
    _

// kernel: skip2d_forward.2
$region0: #{skip2d_forward.2}
  #allocation0 [shape = 'u32[]', space=smem, size = 0x4, offset = 0x4, fixed_abs, tag = 'smem constant byte address 0x4 - core index']
  #allocation1 [shape = 'u32[72,128]{1,0:T(1,128)}', space=vmem, size = 0x9000, scoped, tag = 'internal scratch']
  %s0 = inlined_call_operand.vmem [shape: bf16[128,36], index: 0, kind: input, shape index: {}]
  %s1 = inlined_call_operand.vmem [shape: bf16[36,8], index: 1, kind: input, shape index: {}]
  %s2 = inlined_call_operand.vmem [shape: f32[1,8], index: 2, kind: input, shape index: {}]
  %s3 = inlined_call_operand.vmem [shape: f32[128,8], index: 3, kind: output, shape index: {0}]
  %s4 = inlined_call_operand.vmem [shape: f32[1,8], index: 4, kind: output, shape index: {1}]
  %s5 = inlined_call_operand.vmem [shape: f32[1,8], index: 5, kind: output, shape index: {2}]
  %6 = xla_tuple %s3, %s4, %s5
  %s7 = sld [smem:[#allocation0]]
  $region65: #{skip2d_forward.2} parent=0
    _
  %s9 = ssub.s32 1, %s7
  %s10 = scalar_select 0, %s9, %s7
  loop: start=0, step=1, limit=4
  $region2: #{skip2d_forward.2} parent=0 // loop_pre_header
    _
  $region3: #{skip2d_forward.2} parent=0 // loop_header
    %s12 = sphi 0, %s16
    %p13 = scmp.ge.s32.totalorder %s12, 4
    %s22 = sphi 0, %s24
    %s25 = sphi 0, %s22
    %s26 = sphi 0, %s25
    %s42 = sphi 0, %s26
    %s46 = sphi 0, %s46
    %s48 = sphi 0, %s46
    %s49 = sphi 0, %s48
    %s63 = sphi 0, %s49
    %s67 = sphi 0, %s67
    %s69 = sphi 0, %s67
    %s70 = sphi 0, %s69
    %s84 = sphi 0, %s70
    %s90 = sphi 0, %s92
    %s93 = sphi 0, %s90
    %s94 = sphi 0, %s93
    %s110 = sphi 0, %s94
    %s114 = sphi 0, %s114
    %s116 = sphi 0, %s114
    %s117 = sphi 0, %s116
    %s131 = sphi 0, %s117
    %s135 = sphi 0, %s135
    %s137 = sphi 0, %s135
    %s138 = sphi 0, %s137
    %s152 = sphi 0, %s138
  $region4: #{skip2d_forward.2} parent=0 // loop_header_branch
    %15 = sbr.rel (%p13) target = $region8
  $region5: #{skip2d_forward.2} parent=0 // loop_body
    %s17 = ssub.s32 %s12, 1
    %s18 = ssub.s32 %s12, 2
    %s19 = sadd.s32 %s12, 1
    %s20 = ssub.s32 %s12, %s19
    %p21 = scmp.eq.s32.totalorder %s20, 0
    %s23 = sadd.s32 %s22, 1
    %s24 = scalar_select %p21, %s22, %s23
    %p27 = pneg %p21
    %p28 = scmp.eq.s32.totalorder %s12, 1
    %p29 = por %p27, %p28
    %p30 = scmp.ne.s32.totalorder %s22, %s25
    %p31 = scmp.eq.s32.totalorder %s12, 0
    %p32 = por %p30, %p31
    %p33 = scmp.ne.s32.totalorder %s22, %s25
    %p34 = scmp.eq.s32.totalorder %s17, 1
    %p35 = por %p33, %p34
    %p36 = scmp.ne.s32.totalorder %s25, %s26
    %p37 = scmp.eq.s32.totalorder %s17, 0
    %p38 = por %p36, %p37
    %p39 = scmp.ne.s32.totalorder %s25, %s26
    %p40 = scmp.eq.s32.totalorder %s18, 1
    %p41 = por %p39, %p40
    %p43 = scmp.ne.s32.totalorder %s26, %s42
    %p44 = scmp.eq.s32.totalorder %s18, 0
    %p45 = por %p43, %p44
    %s47 = sadd.s32 %s46, 1
    %p50 = scmp.eq.s32.totalorder %s12, 1
    %p51 = scmp.ne.s32.totalorder %s46, %s48
    %p52 = scmp.eq.s32.totalorder %s12, 0
    %p53 = por %p51, %p52
    %p54 = scmp.ne.s32.totalorder %s46, %s48
    %p55 = scmp.eq.s32.totalorder %s17, 1
    %p56 = por %p54, %p55
    %p57 = scmp.ne.s32.totalorder %s48, %s49
    %p58 = scmp.eq.s32.totalorder %s17, 0
    %p59 = por %p57, %p58
    %p60 = scmp.ne.s32.totalorder %s48, %s49
    %p61 = scmp.eq.s32.totalorder %s18, 1
    %p62 = por %p60, %p61
    %p64 = scmp.ne.s32.totalorder %s49, %s63
    %p65 = scmp.eq.s32.totalorder %s18, 0
    %p66 = por %p64, %p65
    %s68 = sadd.s32 %s67, 1
    %p71 = scmp.eq.s32.totalorder %s12, 1
    %p72 = scmp.ne.s32.totalorder %s67, %s69
    %p73 = scmp.eq.s32.totalorder %s12, 0
    %p74 = por %p72, %p73
    %p75 = scmp.ne.s32.totalorder %s67, %s69
    %p76 = scmp.eq.s32.totalorder %s17, 1
    %p77 = por %p75, %p76
    %p78 = scmp.ne.s32.totalorder %s69, %s70
    %p79 = scmp.eq.s32.totalorder %s17, 0
    %p80 = por %p78, %p79
    %p81 = scmp.ne.s32.totalorder %s69, %s70
    %p82 = scmp.eq.s32.totalorder %s18, 1
    %p83 = por %p81, %p82
    %p85 = scmp.ne.s32.totalorder %s70, %s84
    %p86 = scmp.eq.s32.totalorder %s18, 0
    %p87 = por %p85, %p86
    %s88 = ssub.s32 %s12, %s19
    %p89 = scmp.eq.s32.totalorder %s88, 0
    %s91 = sadd.s32 %s90, 1
    %s92 = scalar_select %p89, %s90, %s91
    %p95 = pneg %p89
    %p96 = scmp.eq.s32.totalorder %s12, 1
    %p97 = por %p95, %p96
    %p98 = scmp.ne.s32.totalorder %s90, %s93
    %p99 = scmp.eq.s32.totalorder %s12, 0
    %p100 = por %p98, %p99
    %p101 = scmp.ne.s32.totalorder %s90, %s93
    %p102 = scmp.eq.s32.totalorder %s17, 1
    %p103 = por %p101, %p102
    %p104 = scmp.ne.s32.totalorder %s93, %s94
    %p105 = scmp.eq.s32.totalorder %s17, 0
    %p106 = por %p104, %p105
    %p107 = scmp.ne.s32.totalorder %s93, %s94
    %p108 = scmp.eq.s32.totalorder %s18, 1
    %p109 = por %p107, %p108
    %p111 = scmp.ne.s32.totalorder %s94, %s110
    %p112 = scmp.eq.s32.totalorder %s18, 0
    %p113 = por %p111, %p112
    %s115 = sadd.s32 %s114, 1
    %p118 = scmp.eq.s32.totalorder %s12, 1
    %p119 = scmp.ne.s32.totalorder %s114, %s116
    %p120 = scmp.eq.s32.totalorder %s12, 0
    %p121 = por %p119, %p120
    %p122 = scmp.ne.s32.totalorder %s114, %s116
    %p123 = scmp.eq.s32.totalorder %s17, 1
    %p124 = por %p122, %p123
    %p125 = scmp.ne.s32.totalorder %s116, %s117
    %p126 = scmp.eq.s32.totalorder %s17, 0
    %p127 = por %p125, %p126
    %p128 = scmp.ne.s32.totalorder %s116, %s117
    %p129 = scmp.eq.s32.totalorder %s18, 1
    %p130 = por %p128, %p129
    %p132 = scmp.ne.s32.totalorder %s117, %s131
    %p133 = scmp.eq.s32.totalorder %s18, 0
    %p134 = por %p132, %p133
    %s136 = sadd.s32 %s135, 1
    %p139 = scmp.eq.s32.totalorder %s12, 1
    %p140 = scmp.ne.s32.totalorder %s135, %s137
    %p141 = scmp.eq.s32.totalorder %s12, 0
    %p142 = por %p140, %p141
    %p143 = scmp.ne.s32.totalorder %s135, %s137
    %p144 = scmp.eq.s32.totalorder %s17, 1
    %p145 = por %p143, %p144
    %p146 = scmp.ne.s32.totalorder %s137, %s138
    %p147 = scmp.eq.s32.totalorder %s17, 0
    %p148 = por %p146, %p147
    %p149 = scmp.ne.s32.totalorder %s137, %s138
    %p150 = scmp.eq.s32.totalorder %s18, 1
    %p151 = por %p149, %p150
    %p153 = scmp.ne.s32.totalorder %s138, %s152
    %p154 = scmp.eq.s32.totalorder %s18, 0
    %p155 = por %p153, %p154
    %p156 = scmp.le.s32.totalorder 1, %s12
    %p157 = scmp.lt.s32.totalorder %s12, 3
    %p158 = pnand %p156, %p157
    %p159 = pneg %p158
    // Predicated region
    $region9: #{skip2d_forward.2} parent=5 // pred_check
      _
    $region10: #{skip2d_forward.2} parent=5 // pred_check_branch
      %161 = sbr.rel (%p158) target = $region12
    $region11: #{skip2d_forward.2} parent=5 // pred_region
      %s162 = ssub.s32 %s12, 1
      // Predicated region
      $region13: #{skip2d_forward.2} parent=11 // pred_check
        %p163 = pneg %p59
      $region14: #{skip2d_forward.2} parent=11 // pred_check_branch
        %165 = sbr.rel (%p163) target = $region16
      $region15: #{skip2d_forward.2} parent=11 // pred_region
        _
      $region16: #{skip2d_forward.2} parent=11 // pred_fallthru
        _
      // Predicated region
      $region17: #{skip2d_forward.2} parent=11 // pred_check
        %p166 = pneg %p80
      $region18: #{skip2d_forward.2} parent=11 // pred_check_branch
        %168 = sbr.rel (%p166) target = $region20
      $region19: #{skip2d_forward.2} parent=11 // pred_region
        _
      $region20: #{skip2d_forward.2} parent=11 // pred_fallthru
        _
    $region12: #{skip2d_forward.2} parent=5 // pred_fallthru
      _
    %p169 = scmp.lt.s32.totalorder %s12, 2
    // Predicated region
    $region21: #{skip2d_forward.2} parent=5 // pred_check
      %p170 = pneg %p169
    $region22: #{skip2d_forward.2} parent=5 // pred_check_branch
      %172 = sbr.rel (%p170) target = $region24
    $region23: #{skip2d_forward.2} parent=5 // pred_region
      // Predicated region
      $region25: #{skip2d_forward.2} parent=23 // pred_check
        %p173 = pneg %p32
      $region26: #{skip2d_forward.2} parent=23 // pred_check_branch
        %175 = sbr.rel (%p173) target = $region28
      $region27: #{skip2d_forward.2} parent=23 // pred_region
        %s176 = smul.u32 8, %s12
        %p177 = scmp.lt.s32.totalorder %s176, 15
        %s178 = scalar_select %p177, %s176, 15
        %s179 = smul.addr %s178, 4
        %s180 = scalar_lea.vmem %s0, %s179
        %s181 = smul.u32 8, %s12
      $region28: #{skip2d_forward.2} parent=23 // pred_fallthru
        _
    $region24: #{skip2d_forward.2} parent=5 // pred_fallthru
      _
    %p182 = scmp.le.s32.totalorder 1, %s12
    %p183 = scmp.lt.s32.totalorder %s12, 3
    %p184 = pnand %p182, %p183
    %p185 = pneg %p184
    // Predicated region
    $region29: #{skip2d_forward.2} parent=5 // pred_check
      _
    $region30: #{skip2d_forward.2} parent=5 // pred_check_branch
      %187 = sbr.rel (%p184) target = $region32
    $region31: #{skip2d_forward.2} parent=5 // pred_region
      %s188 = ssub.s32 %s12, 1
      %s189 = smul.u32 8, %s17
      %p190 = scmp.lt.s32.totalorder %s189, 15
      %s191 = scalar_select %p190, %s189, 15
      %s192 = smul.addr %s191, 4
      %s193 = scalar_lea.vmem %s0, %s192
      %p194 = pneg %p38
      %p195 = pneg %p35
      %p196 = pneg %p59
      %p197 = pneg %p56
      %p198 = pneg %p80
      %p199 = pneg %p77
      %p200 = pneg %p106
      %p201 = pneg %p103
      %s202 = smul.u32 8, %s17
      %p203 = scmp.lt.s32.totalorder %s202, 15
      %s204 = scalar_select %p203, %s202, 15
      %s205 = smul.addr %s204, 8
      %s206 = scalar_lea.vmem %s3, %s205
      %p207 = pneg %p127
      %p208 = pneg %p124
      %p209 = pneg %p148
      %p210 = pneg %p145
      %s211 = smul.u32 8, %s17
      %p212 = scmp.lt.s32.totalorder %s211, 15
      %s213 = scalar_select %p212, %s211, 15
      %s214 = smul.addr %s213, 4
      %s215 = scalar_lea.vmem %s0, %s214
      %s216 = smul.u32 8, %s17
      %s217 = smul.u32 8, %s17
      %p218 = scmp.lt.s32.totalorder %s217, 15
      %s219 = scalar_select %p218, %s217, 15
      %s220 = smul.addr %s219, 8
      %s221 = scalar_lea.vmem %s3, %s220
      %s222 = smul.u32 8, %s17
      %p224 = scmp.eq.s32.totalorder %s17, 0
      // Predicated region
      $region33: #{skip2d_forward.2} parent=31 // pred_check
        %p225 = pneg %p224
      $region34: #{skip2d_forward.2} parent=31 // pred_check_branch
        %227 = sbr.rel (%p225) target = $region36
      $region35: #{skip2d_forward.2} parent=31 // pred_region
        %vm228 = vcmask 57344
        %229 = vst.msk [vmem:[%s4] sm:$0x1] %vm228, 0.0
        %230 = vst.msk [vmem:[%s5] sm:$0x1] %vm228, 0.0
      $region36: #{skip2d_forward.2} parent=31 // pred_fallthru
        _
      %v231 = vld [vmem:[%s215] sm:$0xf]
      %v232 = vld [vmem:[%s215 + $0x4] sm:$0xf]
      %v233 = vld [vmem:[%s215 + $0x8] sm:$0xf]
      %v234 = vld [vmem:[%s215 + $0xc] sm:$0xf]
      %v235 = vld [vmem:[%s215 + $0x10] sm:$0xf]
      %v236 = vld [vmem:[%s215 + $0x14] sm:$0xf]
      %v237 = vld [vmem:[%s215 + $0x18] sm:$0xf]
      %v238 = vld [vmem:[%s215 + $0x1c] sm:$0xf]
      %v239 = vld [vmem:[%s1] sm:$0xf]
      %v240 = vld [vmem:[%s1 + $0x4] sm:$0xf]
      %v241 = vld [vmem:[%s1 + $0x8] sm:$0xf]
      %v242 = vld [vmem:[%s1 + $0xc] sm:$0xf]
      %v243 = vld [vmem:[%s1 + $0x10] sm:$0x3]
      %v244 = vld [vmem:[%s2] sm:$0x1]
      %v246 = vperm.slane %v244, 0
      %v256 = vunpack.c.l.b16 %v231
      %v257 = vunpack.c.l.b16 %v232
      %v258 = vunpack.c.l.b16 %v233
      %v259 = vunpack.c.l.b16 %v234
      %v260 = vunpack.c.l.b16 %v235
      %v261 = vunpack.c.l.b16 %v236
      %v262 = vunpack.c.l.b16 %v237
      %v263 = vunpack.c.l.b16 %v238
      %v264 = vpack.c.b16 %v257, %v256
      %v265 = vpack.c.b16 %v259, %v258
      %v266 = vpack.c.b16 %v261, %v260
      %v267 = vpack.c.b16 %v263, %v262
      %v273 = vunpack.c.l.b16 %v239
      %v274 = vunpack.c.l.b16 %v240
      %v275 = vunpack.c.l.b16 %v241
      %v276 = vunpack.c.l.b16 %v242
      %v277 = vunpack.c.l.b16 %v243
      %v278 = vpack.c.b16 %v274, %v273
      %v279 = vpack.c.b16 %v276, %v275
      %v280 = vpack.c.b16 %v277, %v277
      %vm283 = vcmask 293888
      %v285 = vsel %vm283, %v264, 0
      %v288 = vsel %vm283, %v265, 0
      %v291 = vsel %vm283, %v266, 0
      %v294 = vsel %vm283, %v267, 0
      %vm296 = vcmask 1041408
      %v298 = vsel %vm296, %v280, 0
      %300 = vmatpush.bf16.msra.mxu0 0
      %301 = vmatpush.bf16.msra.mxu0 0
      %302 = vmatpush.bf16.msra.mxu0 0
      %303 = vmatpush.bf16.msra.mxu0 0
      %304 = vmatpush.bf16.msra.mxu0 0
      %305 = vmatpush.bf16.msra.mxu0 %v298
      %306 = vmatpush.bf16.msra.mxu0 %v279
      %307 = vmatpush.bf16.msra.mxu0 %v278
      %308 = vmatmul.bf16.gmra.mxu0 %v285
      %v309 = vpop.f32.mrf.mxu0
      %v310 = vadd.f32 %v246, %v309
      %v311 = vpop.f32.mrf.mxu0
      %v312 = vadd.f32 %v246, %v311
      %313 = vmatmul.bf16.gmra.mxu0 %v288
      %v314 = vpop.f32.mrf.mxu0
      %v315 = vadd.f32 %v246, %v314
      %v316 = vpop.f32.mrf.mxu0
      %v317 = vadd.f32 %v246, %v316
      %318 = vmatmul.bf16.gmra.mxu0 %v291
      %v319 = vpop.f32.mrf.mxu0
      %v320 = vadd.f32 %v246, %v319
      %v321 = vpop.f32.mrf.mxu0
      %v322 = vadd.f32 %v246, %v321
      %323 = vmatmul.bf16.gmra.mxu0 %v294
      %v324 = vpop.f32.mrf.mxu0
      %v325 = vadd.f32 %v246, %v324
      %v326 = vpop.f32.mrf.mxu0
      %v327 = vadd.f32 %v246, %v326
      %328 = vdwg.mxu0
      %vm329 = vcmask 64512
      %330 = vst.msk [vmem:[%s221] sm:$0xff] %vm329, %v310
      %331 = vst.msk [vmem:[%s221 + $0x8] sm:$0xff] %vm329, %v312
      %332 = vst.msk [vmem:[%s221 + $0x10] sm:$0xff] %vm329, %v315
      %333 = vst.msk [vmem:[%s221 + $0x18] sm:$0xff] %vm329, %v317
      %334 = vst.msk [vmem:[%s221 + $0x20] sm:$0xff] %vm329, %v320
      %335 = vst.msk [vmem:[%s221 + $0x28] sm:$0xff] %vm329, %v322
      %336 = vst.msk [vmem:[%s221 + $0x30] sm:$0xff] %vm329, %v325
      %337 = vst.msk [vmem:[%s221 + $0x38] sm:$0xff] %vm329, %v327
      %v338 = vld [vmem:[%s4] sm:$0x1]
      %v339 = vsel %vm329, %v310, 0.0
      %v340 = vsel %vm329, %v312, 0.0
      %v341 = vadd.f32 %v339, %v340
      %v342 = vsel %vm329, %v315, 0.0
      %v343 = vadd.f32 %v341, %v342
      %v344 = vsel %vm329, %v317, 0.0
      %v345 = vadd.f32 %v343, %v344
      %v346 = vsel %vm329, %v320, 0.0
      %v347 = vadd.f32 %v345, %v346
      %v348 = vsel %vm329, %v322, 0.0
      %v349 = vadd.f32 %v347, %v348
      %v350 = vsel %vm329, %v325, 0.0
      %v351 = vadd.f32 %v349, %v350
      %v352 = vsel %vm329, %v327, 0.0
      %v353 = vadd.f32 %v351, %v352
      %v354 = vrot.slane %v353, 4
      %v355 = vadd.f32 %v353, %v354
      %v356 = vrot.slane %v355, 2
      %v357 = vadd.f32 %v355, %v356
      %v358 = vrot.slane %v357, 1
      %v359 = vadd.f32 %v357, %v358
      %v360 = vadd.f32 %v338, %v359
      %vm361 = vcmask 57344
      %362 = vst.msk [vmem:[%s4] sm:$0x1] %vm361, %v360
      %v363 = vld [vmem:[%s5] sm:$0x1]
      %v364 = vmul.f32 %v310, %v310
      %v365 = vmul.f32 %v312, %v312
      %v366 = vmul.f32 %v315, %v315
      %v367 = vmul.f32 %v317, %v317
      %v368 = vmul.f32 %v320, %v320
      %v369 = vmul.f32 %v322, %v322
      %v370 = vmul.f32 %v325, %v325
      %v371 = vmul.f32 %v327, %v327
      %v372 = vsel %vm329, %v364, 0.0
      %v373 = vsel %vm329, %v365, 0.0
      %v374 = vadd.f32 %v372, %v373
      %v375 = vsel %vm329, %v366, 0.0
      %v376 = vadd.f32 %v374, %v375
      %v377 = vsel %vm329, %v367, 0.0
      %v378 = vadd.f32 %v376, %v377
      %v379 = vsel %vm329, %v368, 0.0
      %v380 = vadd.f32 %v378, %v379
      %v381 = vsel %vm329, %v369, 0.0
      %v382 = vadd.f32 %v380, %v381
      %v383 = vsel %vm329, %v370, 0.0
      %v384 = vadd.f32 %v382, %v383
      %v385 = vsel %vm329, %v371, 0.0
      %v386 = vadd.f32 %v384, %v385
      %v387 = vrot.slane %v386, 4
      %v388 = vadd.f32 %v386, %v387
      %v389 = vrot.slane %v388, 2
      %v390 = vadd.f32 %v388, %v389
      %v391 = vrot.slane %v390, 1
      %v392 = vadd.f32 %v390, %v391
      %v393 = vadd.f32 %v363, %v392
      %394 = vst.msk [vmem:[%s5] sm:$0x1] %vm361, %v393
      %s395 = smul.u32 8, %s17
      %p396 = scmp.lt.s32.totalorder %s395, 15
      %s397 = scalar_select %p396, %s395, 15
      %s398 = smul.addr %s397, 8
      %s399 = scalar_lea.vmem %s3, %s398
      // Predicated region
      $region37: #{skip2d_forward.2} parent=31 // pred_check
        %p400 = pneg %p103
      $region38: #{skip2d_forward.2} parent=31 // pred_check_branch
        %402 = sbr.rel (%p400) target = $region40
      $region39: #{skip2d_forward.2} parent=31 // pred_region
        %s403 = smul.u32 8, %s17
      $region40: #{skip2d_forward.2} parent=31 // pred_fallthru
        _
      // Predicated region
      $region41: #{skip2d_forward.2} parent=31 // pred_check
        %p404 = pneg %p124
      $region42: #{skip2d_forward.2} parent=31 // pred_check_branch
        %406 = sbr.rel (%p404) target = $region44
      $region43: #{skip2d_forward.2} parent=31 // pred_region
        _
      $region44: #{skip2d_forward.2} parent=31 // pred_fallthru
        _
      // Predicated region
      $region45: #{skip2d_forward.2} parent=31 // pred_check
        %p407 = pneg %p145
      $region46: #{skip2d_forward.2} parent=31 // pred_check_branch
        %409 = sbr.rel (%p407) target = $region48
      $region47: #{skip2d_forward.2} parent=31 // pred_region
        _
      $region48: #{skip2d_forward.2} parent=31 // pred_fallthru
        _
      // Predicated region
      $region49: #{skip2d_forward.2} parent=31 // pred_check
        %p410 = pneg %p124
      $region50: #{skip2d_forward.2} parent=31 // pred_check_branch
        %412 = sbr.rel (%p410) target = $region52
      $region51: #{skip2d_forward.2} parent=31 // pred_region
        _
      $region52: #{skip2d_forward.2} parent=31 // pred_fallthru
        _
      // Predicated region
      $region53: #{skip2d_forward.2} parent=31 // pred_check
        %p413 = pneg %p145
      $region54: #{skip2d_forward.2} parent=31 // pred_check_branch
        %415 = sbr.rel (%p413) target = $region56
      $region55: #{skip2d_forward.2} parent=31 // pred_region
        _
      $region56: #{skip2d_forward.2} parent=31 // pred_fallthru
        _
    $region32: #{skip2d_forward.2} parent=5 // pred_fallthru
      _
    %p416 = scmp.le.s32.totalorder 2, %s12
    // Predicated region
    $region57: #{skip2d_forward.2} parent=5 // pred_check
      %p417 = pneg %p416
    $region58: #{skip2d_forward.2} parent=5 // pred_check_branch
      %419 = sbr.rel (%p417) target = $region60
    $region59: #{skip2d_forward.2} parent=5 // pred_region
      %s420 = ssub.s32 %s12, 2
      // Predicated region
      $region61: #{skip2d_forward.2} parent=59 // pred_check
        %p421 = pneg %p109
      $region62: #{skip2d_forward.2} parent=59 // pred_check_branch
        %423 = sbr.rel (%p421) target = $region64
      $region63: #{skip2d_forward.2} parent=59 // pred_region
        %s424 = smul.u32 8, %s18
        %p425 = scmp.lt.s32.totalorder %s424, 15
        %s426 = scalar_select %p425, %s424, 15
        %s427 = smul.addr %s426, 8
        %s428 = scalar_lea.vmem %s3, %s427
      $region64: #{skip2d_forward.2} parent=59 // pred_fallthru
        _
    $region60: #{skip2d_forward.2} parent=5 // pred_fallthru
      _
  $region6: #{skip2d_forward.2} parent=0 // loop_footer
    %s16 = sadd.s32 1, %s12
  $region7: #{skip2d_forward.2} parent=0 // loop_footer_branch
    %11 = sbr.rel target = $region3
  $region8: #{skip2d_forward.2} parent=0 // loop_exit
    _

</llo_original>
